<compile_context>
chip_gen: v7x
topology: tpu7x:2x2x1
jax: 0.10.0
libtpu: 0.0.40
codegen_flags: <defaults>
</compile_context>

<pallas_src>
import jax
import jax.numpy as jnp
from jax.experimental import pallas as pl
from jax.experimental.pallas import tpu as pltpu

LANE = 128
SUBLANE = 8


def _round_up(x, m):
    return (x + m - 1) // m * m


def actor_kernel(ub_ref, x_ref, w1_ref, b1_ref, w2_ref, b2_ref, w3_ref, b3_ref, o_ref):
    # Hoist the scalar read once per tile (no re-materialized SMEM->vreg broadcast
    # inside the store expression).
    ub = ub_ref[0, 0]

    # hidden1 + ReLU  (bf16 operands, f32 accumulation on the MXU)
    x = x_ref[...]                                                  # bf16 (TB, K)
    h1 = jnp.dot(x, w1_ref[...], preferred_element_type=jnp.float32) + b1_ref[...]
    h1 = jnp.maximum(h1, 0.0)                                       # f32 elementwise

    # hidden2 + ReLU
    h2 = jnp.dot(h1.astype(jnp.bfloat16), w2_ref[...],
                 preferred_element_type=jnp.float32) + b2_ref[...]
    h2 = jnp.maximum(h2, 0.0)

    # mu + tanh, scale by upper_bound; output tile is lane-dense (A = multiple of 128)
    mu = jnp.dot(h2.astype(jnp.bfloat16), w3_ref[...],
                 preferred_element_type=jnp.float32) + b3_ref[...]
    o_ref[...] = (jnp.tanh(mu) * ub).astype(o_ref.dtype)


def prepare_actor_params(params):
    """Pad feature/action dims to lane-dense multiples of 128 and cast matmul
    weights to bf16 (one-time cost). Biases stay f32."""
    w1, b1 = params["w1"], params["b1"]
    w2, b2 = params["w2"], params["b2"]
    w3, b3 = params["w3"], params["b3"]
    num_states, h1 = w1.shape
    h2 = w2.shape[1]
    num_actions = w3.shape[1]

    k_pad = _round_up(num_states, LANE)
    a_pad = _round_up(num_actions, LANE)

    w1p = jnp.pad(w1, ((0, k_pad - num_states), (0, 0)))     # zero rows: no-op in matmul
    w3p = jnp.pad(w3, ((0, 0), (0, a_pad - num_actions)))    # zero cols: sliced off later
    b3p = jnp.pad(b3, ((0, 0), (0, a_pad - num_actions)))

    return {
        "w1": w1p.astype(jnp.bfloat16), "b1": b1.astype(jnp.float32),
        "w2": w2.astype(jnp.bfloat16), "b2": b2.astype(jnp.float32),
        "w3": w3p.astype(jnp.bfloat16), "b3": b3p.astype(jnp.float32),
        "num_states": num_states, "num_actions": num_actions,
        "k_pad": k_pad, "a_pad": a_pad, "h1": h1, "h2": h2,
    }


def actor_forward(state, upper_bound, prepped, *, max_batch_tile=1024):
    """state: [B, num_states] f32; upper_bound: scalar; prepped: prepare_actor_params(...)"""
    B, num_states = state.shape
    assert num_states == prepped["num_states"]
    K, A = prepped["k_pad"], prepped["a_pad"]
    H1, H2 = prepped["h1"], prepped["h2"]
    num_actions = prepped["num_actions"]

    # Batch tile: big (hides DMA behind MXU work) but never larger than needed.
    TB = min(max_batch_tile, _round_up(B, SUBLANE))
    Bp = _round_up(B, TB)
    grid = (Bp // TB,)

    # Pad batch + feature dims, feed the MXU bf16 operands (halves state DMA bytes).
    x = jnp.pad(state.astype(jnp.float32),
                ((0, Bp - B), (0, K - num_states))).astype(jnp.bfloat16)
    ub = jnp.asarray(upper_bound, jnp.float32).reshape(1, 1)

    fixed = lambda i: (0, 0)  # weights/biases resident across the whole grid
    in_specs = [
        pl.BlockSpec(memory_space=pltpu.SMEM),           # upper_bound scalar
        pl.BlockSpec((TB, K), lambda i: (i, 0)),          # state tile (pipelined)
        pl.BlockSpec((K, H1), fixed),
        pl.BlockSpec((1, H1), fixed),
        pl.BlockSpec((H1, H2), fixed),
        pl.BlockSpec((1, H2), fixed),
        pl.BlockSpec((H2, A), fixed),
        pl.BlockSpec((1, A), fixed),
    ]
    out_specs = pl.BlockSpec((TB, A), lambda i: (i, 0))   # lane-dense output tile

    # VMEM budget: double-buffered x/out tiles + weights + f32/bf16 activations.
    tile_bytes = 2 * TB * K * 2 + 2 * TB * A * 4
    weight_bytes = 2 * 2 * (K * H1 + H1 * H2 + H2 * A) + 2 * 4 * (H1 + H2 + A)
    act_bytes = TB * (H1 + H2) * (4 + 2) + TB * A * 4
    vmem_limit = int(min(max(2 * (tile_bytes + weight_bytes + act_bytes) + (8 << 20),
                             32 << 20), 48 << 20))       # always < v7x 64 MiB physical

    out = pl.pallas_call(
        actor_kernel,
        out_shape=jax.ShapeDtypeStruct((Bp, A), jnp.float32),
        grid=grid,
        in_specs=in_specs,
        out_specs=out_specs,
        compiler_params=pltpu.CompilerParams(
            dimension_semantics=("parallel",),            # megacore sharding on v7x
            vmem_limit_bytes=vmem_limit,
        ),
    )(ub, x, prepped["w1"], prepped["b1"], prepped["w2"], prepped["b2"],
      prepped["w3"], prepped["b3"])

    return out[:B, :num_actions]


def init_params(key, num_states, num_actions, hidden_size=(128, 128)):
    """Deterministic synthetic init mirroring nn.Linear parameter shapes
    (weights stored pre-transposed as [in, out])."""
    h1, h2 = hidden_size
    k = jax.random.split(key, 6)

    def lin(kw, kb, fan_in, fan_out):
        bound = 1.0 / jnp.sqrt(fan_in)
        w = jax.random.uniform(kw, (fan_in, fan_out), jnp.float32, -bound, bound)
        b = jax.random.uniform(kb, (1, fan_out), jnp.float32, -bound, bound)
        return w, b

    w1, b1 = lin(k[0], k[1], num_states, h1)
    w2, b2 = lin(k[2], k[3], h1, h2)
    w3, b3 = lin(k[4], k[5], h2, num_actions)
    return {"w1": w1, "b1": b1, "w2": w2, "b2": b2, "w3": w3, "b3": b3}


if __name__ == "__main__":
    # Small shapes consistent with Actor(num_actions, num_states, hidden_size)
    batch = 8
    num_states = 32
    num_actions = 8
    hidden_size = (128, 128)
    upper_bound = 2.0

    key = jax.random.PRNGKey(0)
    k_param, k_state = jax.random.split(key)
    params = init_params(k_param, num_states, num_actions, hidden_size)
    state = jax.random.normal(k_state, (batch, num_states), jnp.float32)

    prepped = prepare_actor_params(params)
    out = actor_forward(state, upper_bound, prepped)
    jax.block_until_ready(out)

    # Pure-JAX f32 reference (kernel uses bf16 matmul operands -> loose tolerance)
    ref = state
    ref = jnp.maximum(ref @ params["w1"] + params["b1"], 0.0)
    ref = jnp.maximum(ref @ params["w2"] + params["b2"], 0.0)
    ref = jnp.tanh(ref @ params["w3"] + params["b3"]) * upper_bound

    assert out.shape == (batch, num_actions)
    assert jnp.allclose(out, ref, atol=3e-2, rtol=3e-2), (
        float(jnp.max(jnp.abs(out - ref))))

    print("KERNEL_OK")
</pallas_src>

<mosaic_0001>
module attributes {stable_mosaic.version = 11 : i64} {
  func.func @actor_kernel(%arg0: i32, %arg1: memref<1x1xf32, #tpu.memory_space<smem>>, %arg2: memref<8x128xbf16, #tpu.memory_space<vmem>>, %arg3: memref<128x128xbf16, #tpu.memory_space<vmem>>, %arg4: memref<1x128xf32, #tpu.memory_space<vmem>>, %arg5: memref<128x128xbf16, #tpu.memory_space<vmem>>, %arg6: memref<1x128xf32, #tpu.memory_space<vmem>>, %arg7: memref<128x128xbf16, #tpu.memory_space<vmem>>, %arg8: memref<1x128xf32, #tpu.memory_space<vmem>>, %arg9: memref<8x128xf32, #tpu.memory_space<vmem>>) attributes {dimension_semantics = [#tpu.dimension_semantics<parallel>], iteration_bounds = array<i64: 1>, scalar_prefetch = 0 : i64, scratch_operands = 0 : i64, tpu.core_type = #tpu.core_type<tc>, window_params = [{transform_indices = @transform_0, window_bounds = array<i64: 1, 1>}, {transform_indices = @transform_1, window_bounds = array<i64: 8, 128>}, {pipeline_mode = #tpu.pipeline_mode<synchronous>, transform_indices = @transform_2, window_bounds = array<i64: 128, 128>}, {pipeline_mode = #tpu.pipeline_mode<synchronous>, transform_indices = @transform_3, window_bounds = array<i64: 1, 128>}, {pipeline_mode = #tpu.pipeline_mode<synchronous>, transform_indices = @transform_4, window_bounds = array<i64: 128, 128>}, {pipeline_mode = #tpu.pipeline_mode<synchronous>, transform_indices = @transform_5, window_bounds = array<i64: 1, 128>}, {pipeline_mode = #tpu.pipeline_mode<synchronous>, transform_indices = @transform_6, window_bounds = array<i64: 128, 128>}, {pipeline_mode = #tpu.pipeline_mode<synchronous>, transform_indices = @transform_7, window_bounds = array<i64: 1, 128>}, {transform_indices = @transform_8, window_bounds = array<i64: 8, 128>}]} {
    %c0 = arith.constant 0 : index
    %c0_0 = arith.constant 0 : index
    %0 = memref.load %arg1[%c0, %c0_0] : memref<1x1xf32, #tpu.memory_space<smem>>
    %c0_1 = arith.constant 0 : index
    %c0_2 = arith.constant 0 : index
    %1 = vector.load %arg2[%c0_1, %c0_2] : memref<8x128xbf16, #tpu.memory_space<vmem>>, vector<8x128xbf16>
    %c0_3 = arith.constant 0 : index
    %c0_4 = arith.constant 0 : index
    %2 = vector.load %arg3[%c0_3, %c0_4] : memref<128x128xbf16, #tpu.memory_space<vmem>>, vector<128x128xbf16>
    %cst = arith.constant dense<0.000000e+00> : vector<8x128xf32>
    %3 = tpu.matmul %1, %2, %cst {dimension_numbers = #tpu.dot_dimension_numbers<[1], [0], [0], [1], [0, 0, 1, 1], [], []>} : vector<8x128xbf16>, vector<128x128xbf16>, vector<8x128xf32> -> vector<8x128xf32>
    %c0_5 = arith.constant 0 : index
    %c0_6 = arith.constant 0 : index
    %4 = vector.load %arg4[%c0_5, %c0_6] : memref<1x128xf32, #tpu.memory_space<vmem>>, vector<1x128xf32>
    %5 = vector.broadcast %4 : vector<1x128xf32> to vector<8x128xf32>
    %6 = arith.addf %3, %5 : vector<8x128xf32>
    %cst_7 = arith.constant 0.000000e+00 : f32
    %7 = vector.broadcast %cst_7 : f32 to vector<8x128xf32>
    %8 = arith.maximumf %6, %7 : vector<8x128xf32>
    %9 = arith.truncf %8 : vector<8x128xf32> to vector<8x128xbf16>
    %c0_8 = arith.constant 0 : index
    %c0_9 = arith.constant 0 : index
    %10 = vector.load %arg5[%c0_8, %c0_9] : memref<128x128xbf16, #tpu.memory_space<vmem>>, vector<128x128xbf16>
    %cst_10 = arith.constant dense<0.000000e+00> : vector<8x128xf32>
    %11 = tpu.matmul %9, %10, %cst_10 {dimension_numbers = #tpu.dot_dimension_numbers<[1], [0], [0], [1], [0, 0, 1, 1], [], []>} : vector<8x128xbf16>, vector<128x128xbf16>, vector<8x128xf32> -> vector<8x128xf32>
    %c0_11 = arith.constant 0 : index
    %c0_12 = arith.constant 0 : index
    %12 = vector.load %arg6[%c0_11, %c0_12] : memref<1x128xf32, #tpu.memory_space<vmem>>, vector<1x128xf32>
    %13 = vector.broadcast %12 : vector<1x128xf32> to vector<8x128xf32>
    %14 = arith.addf %11, %13 : vector<8x128xf32>
    %cst_13 = arith.constant 0.000000e+00 : f32
    %15 = vector.broadcast %cst_13 : f32 to vector<8x128xf32>
    %16 = arith.maximumf %14, %15 : vector<8x128xf32>
    %17 = arith.truncf %16 : vector<8x128xf32> to vector<8x128xbf16>
    %c0_14 = arith.constant 0 : index
    %c0_15 = arith.constant 0 : index
    %18 = vector.load %arg7[%c0_14, %c0_15] : memref<128x128xbf16, #tpu.memory_space<vmem>>, vector<128x128xbf16>
    %cst_16 = arith.constant dense<0.000000e+00> : vector<8x128xf32>
    %19 = tpu.matmul %17, %18, %cst_16 {dimension_numbers = #tpu.dot_dimension_numbers<[1], [0], [0], [1], [0, 0, 1, 1], [], []>} : vector<8x128xbf16>, vector<128x128xbf16>, vector<8x128xf32> -> vector<8x128xf32>
    %c0_17 = arith.constant 0 : index
    %c0_18 = arith.constant 0 : index
    %20 = vector.load %arg8[%c0_17, %c0_18] : memref<1x128xf32, #tpu.memory_space<vmem>>, vector<1x128xf32>
    %21 = vector.broadcast %20 : vector<1x128xf32> to vector<8x128xf32>
    %22 = arith.addf %19, %21 : vector<8x128xf32>
    %23 = math.tanh %22 : vector<8x128xf32>
    %24 = vector.broadcast %0 : f32 to vector<8x128xf32>
    %25 = arith.mulf %23, %24 : vector<8x128xf32>
    %c0_19 = arith.constant 0 : index
    %c0_20 = arith.constant 0 : index
    %26 = vector.load %arg9[%c0_19, %c0_20] : memref<8x128xf32, #tpu.memory_space<vmem>>, vector<8x128xf32>
    tpu.vector_store %arg9[%c0_19, %c0_20], %25 {strides = array<i32>} : memref<8x128xf32, #tpu.memory_space<vmem>>, vector<8x128xf32>,
    return
  }
  func.func @transform_0(%arg0: i32) -> (i32, i32) {
    %c0_i32 = arith.constant 0 : i32
    %c0_i32_0 = arith.constant 0 : i32
    %c0_i32_1 = arith.constant 0 : i32
    return %c0_i32, %c0_i32_0 : i32, i32
  }
  func.func @transform_1(%arg0: i32) -> (i32, i32) {
    %c0_i32 = arith.constant 0 : i32
    %c0_i32_0 = arith.constant 0 : i32
    return %arg0, %c0_i32 : i32, i32
  }
  func.func @transform_2(%arg0: i32) -> (i32, i32) {
    %c0_i32 = arith.constant 0 : i32
    %c0_i32_0 = arith.constant 0 : i32
    %c0_i32_1 = arith.constant 0 : i32
    return %c0_i32, %c0_i32_0 : i32, i32
  }
  func.func @transform_3(%arg0: i32) -> (i32, i32) {
    %c0_i32 = arith.constant 0 : i32
    %c0_i32_0 = arith.constant 0 : i32
    %c0_i32_1 = arith.constant 0 : i32
    return %c0_i32, %c0_i32_0 : i32, i32
  }
  func.func @transform_4(%arg0: i32) -> (i32, i32) {
    %c0_i32 = arith.constant 0 : i32
    %c0_i32_0 = arith.constant 0 : i32
    %c0_i32_1 = arith.constant 0 : i32
    return %c0_i32, %c0_i32_0 : i32, i32
  }
  func.func @transform_5(%arg0: i32) -> (i32, i32) {
    %c0_i32 = arith.constant 0 : i32
    %c0_i32_0 = arith.constant 0 : i32
    %c0_i32_1 = arith.constant 0 : i32
    return %c0_i32, %c0_i32_0 : i32, i32
  }
  func.func @transform_6(%arg0: i32) -> (i32, i32) {
    %c0_i32 = arith.constant 0 : i32
    %c0_i32_0 = arith.constant 0 : i32
    %c0_i32_1 = arith.constant 0 : i32
    return %c0_i32, %c0_i32_0 : i32, i32
  }
  func.func @transform_7(%arg0: i32) -> (i32, i32) {
    %c0_i32 = arith.constant 0 : i32
    %c0_i32_0 = arith.constant 0 : i32
    %c0_i32_1 = arith.constant 0 : i32
    return %c0_i32, %c0_i32_0 : i32, i32
  }
  func.func @transform_8(%arg0: i32) -> (i32, i32) {
    %c0_i32 = arith.constant 0 : i32
    %c0_i32_0 = arith.constant 0 : i32
    return %arg0, %c0_i32 : i32, i32
  }
}

</mosaic_0001>

<llo_original>
// kernel: tpu_custom_call.1
$region0: #{tpu_custom_call.1}
  #allocation0 [shape = 'u32[]', space=smem, size = 0x4, offset = 0x4, fixed_abs, tag = 'smem constant byte address 0x4 - core index']
  #allocation1 [shape = 'u32[144,128]{1,0:T(1,128)}', space=vmem, size = 0x12000, scoped, tag = 'internal scratch']
  #allocation2 [shape = 'f32[1,1]{1,0:T(1,128)S(6)}', space=smem, size = 0x200, scoped, tag = 'scoped memory for tpu_custom_call.1']
  %s0 = inlined_call_operand.<no memory space> [shape: f32[1,1], index: 0, kind: input, shape index: {}]
  %s1 = inlined_call_operand.hbm [shape: bf16[8,128], index: 1, kind: input, shape index: {}]
  %s2 = inlined_call_operand.hbm [shape: bf16[128,128], index: 2, kind: input, shape index: {}]
  %s3 = inlined_call_operand.vmem [shape: f32[1,128], index: 3, kind: input, shape index: {}]
  %s4 = inlined_call_operand.hbm [shape: bf16[128,128], index: 4, kind: input, shape index: {}]
  %s5 = inlined_call_operand.vmem [shape: f32[1,128], index: 5, kind: input, shape index: {}]
  %s6 = inlined_call_operand.hbm [shape: bf16[128,128], index: 6, kind: input, shape index: {}]
  %s7 = inlined_call_operand.vmem [shape: f32[1,128], index: 7, kind: input, shape index: {}]
  %s8 = inlined_call_operand.hbm [shape: f32[8,128], index: 8, kind: output, shape index: {}]
  %s9 = sld [smem:[#allocation0]]
  $region58: #{tpu_custom_call.1} parent=0
    _
  %s11 = ssub.s32 1, %s9
  %s12 = scalar_select 0, %s11, %s9
  %13 = sst [smem:[#allocation2]] %s0
  $region1: #{tpu_custom_call.1} parent=0
    #allocation3 [shape = 'u8[2048]{0}', space=vmem, size = 0x800, scoped, tag = 'input window, operand 1, single buffered']
    #allocation4 [shape = 's32[1]{0}', space=sflag, size = 0x4, scoped, tag = 'scoped memory for tpu_custom_call.1']
    #allocation5 [shape = 's32[1]{0}', space=sflag, size = 0x4, scoped, tag = 'scoped memory for tpu_custom_call.1']
    #allocation6 [shape = 'u8[32768]{0}', space=vmem, size = 0x8000, scoped, tag = 'input window, operand 2, single buffered']
    #allocation7 [shape = 's32[1]{0}', space=sflag, size = 0x4, scoped, tag = 'scoped memory for tpu_custom_call.1']
    #allocation8 [shape = 'u8[32768]{0}', space=vmem, size = 0x8000, scoped, tag = 'input window, operand 4, single buffered']
    #allocation9 [shape = 'u8[32768]{0}', space=vmem, size = 0x8000, scoped, tag = 'input window, operand 6, single buffered']
    #allocation10 [shape = 's32[1]{0}', space=sflag, size = 0x4, scoped, tag = 'scoped memory for tpu_custom_call.1']
    #allocation11 [shape = 'u8[4096]{0}', space=vmem, size = 0x1000, scoped, tag = 'output window, operand 0, single buffered']
    %14 = vsyncpa [#allocation4], 0
    %15 = vsyncpa [#allocation7], 0
    %16 = vsyncpa [#allocation10], 0
    %17 = vsyncpa [#allocation5], 0
    // Predicated region
    $region2: #{tpu_custom_call.1} parent=1 // pred_check
      _
    $region3: #{tpu_custom_call.1} parent=1 // pred_check_branch
      %19 = sbr.rel (0) target = $region5
    $region4: #{tpu_custom_call.1} parent=1 // pred_region
      _
    $region5: #{tpu_custom_call.1} parent=1 // pred_fallthru
      _
    // Predicated region
    $region6: #{tpu_custom_call.1} parent=1 // pred_check
      _
    $region7: #{tpu_custom_call.1} parent=1 // pred_check_branch
      %21 = sbr.rel (0) target = $region9
    $region8: #{tpu_custom_call.1} parent=1 // pred_region
      %s23 = ssub.s32 64, 64
      %24 = vsyncadd [#allocation4], %s23
      %s26 = sshll.u32 [#allocation3], 4
      %s27 = int_to_ptr.vmem [resolvable:$true] %s26
      %29 = dma.hbm_to_vmem [thread:$0]  %s1, 64, %s27, [#allocation4]
    $region9: #{tpu_custom_call.1} parent=1 // pred_fallthru
      _
    // Predicated region
    $region10: #{tpu_custom_call.1} parent=1 // pred_check
      _
    $region11: #{tpu_custom_call.1} parent=1 // pred_check_branch
      %31 = sbr.rel (0) target = $region13
    $region12: #{tpu_custom_call.1} parent=1 // pred_region
      %s33 = ssub.s32 1024, 1024
      %34 = vsyncadd [#allocation7], %s33
      %s35 = sshll.u32 [#allocation6], 4
      %s36 = int_to_ptr.vmem [resolvable:$true] %s35
      %41 = dma.hbm_to_vmem [thread:$0]  %s2, 1024, %s36, [#allocation7], 64, 64, 4
    $region13: #{tpu_custom_call.1} parent=1 // pred_fallthru
      _
    // Predicated region
    $region14: #{tpu_custom_call.1} parent=1 // pred_check
      _
    $region15: #{tpu_custom_call.1} parent=1 // pred_check_branch
      %43 = sbr.rel (0) target = $region17
    $region16: #{tpu_custom_call.1} parent=1 // pred_region
      _
    $region17: #{tpu_custom_call.1} parent=1 // pred_fallthru
      _
    // Predicated region
    $region18: #{tpu_custom_call.1} parent=1 // pred_check
      _
    $region19: #{tpu_custom_call.1} parent=1 // pred_check_branch
      %45 = sbr.rel (0) target = $region21
    $region20: #{tpu_custom_call.1} parent=1 // pred_region
      %s47 = ssub.s32 1024, 1024
      %48 = vsyncadd [#allocation7], %s47
      %s49 = sshll.u32 [#allocation8], 4
      %s50 = int_to_ptr.vmem [resolvable:$true] %s49
      %55 = dma.hbm_to_vmem [thread:$0]  %s4, 1024, %s50, [#allocation7], 64, 64, 4
    $region21: #{tpu_custom_call.1} parent=1 // pred_fallthru
      _
    // Predicated region
    $region22: #{tpu_custom_call.1} parent=1 // pred_check
      _
    $region23: #{tpu_custom_call.1} parent=1 // pred_check_branch
      %57 = sbr.rel (0) target = $region25
    $region24: #{tpu_custom_call.1} parent=1 // pred_region
      _
    $region25: #{tpu_custom_call.1} parent=1 // pred_fallthru
      _
    // Predicated region
    $region26: #{tpu_custom_call.1} parent=1 // pred_check
      _
    $region27: #{tpu_custom_call.1} parent=1 // pred_check_branch
      %59 = sbr.rel (0) target = $region29
    $region28: #{tpu_custom_call.1} parent=1 // pred_region
      %s61 = ssub.s32 1024, 1024
      %62 = vsyncadd [#allocation10], %s61
      %s63 = sshll.u32 [#allocation9], 4
      %s64 = int_to_ptr.vmem [resolvable:$true] %s63
      %69 = dma.hbm_to_vmem [thread:$0]  %s6, 1024, %s64, [#allocation10], 64, 64, 4
    $region29: #{tpu_custom_call.1} parent=1 // pred_fallthru
      _
    // Predicated region
    $region30: #{tpu_custom_call.1} parent=1 // pred_check
      _
    $region31: #{tpu_custom_call.1} parent=1 // pred_check_branch
      %71 = sbr.rel (0) target = $region33
    $region32: #{tpu_custom_call.1} parent=1 // pred_region
      _
    $region33: #{tpu_custom_call.1} parent=1 // pred_fallthru
      _
    // Predicated region
    $region34: #{tpu_custom_call.1} parent=1 // pred_check
      _
    $region35: #{tpu_custom_call.1} parent=1 // pred_check_branch
      %73 = sbr.rel (0) target = $region37
    $region36: #{tpu_custom_call.1} parent=1 // pred_region
      %74 = dma.done [#allocation4], 64
    $region37: #{tpu_custom_call.1} parent=1 // pred_fallthru
      _
    // Predicated region
    $region38: #{tpu_custom_call.1} parent=1 // pred_check
      _
    $region39: #{tpu_custom_call.1} parent=1 // pred_check_branch
      %76 = sbr.rel (0) target = $region41
    $region40: #{tpu_custom_call.1} parent=1 // pred_region
      %77 = dma.done [#allocation7], 1024
    $region41: #{tpu_custom_call.1} parent=1 // pred_fallthru
      _
    // Predicated region
    $region42: #{tpu_custom_call.1} parent=1 // pred_check
      _
    $region43: #{tpu_custom_call.1} parent=1 // pred_check_branch
      %79 = sbr.rel (0) target = $region45
    $region44: #{tpu_custom_call.1} parent=1 // pred_region
      %80 = dma.done [#allocation7], 1024
    $region45: #{tpu_custom_call.1} parent=1 // pred_fallthru
      _
    // Predicated region
    $region46: #{tpu_custom_call.1} parent=1 // pred_check
      _
    $region47: #{tpu_custom_call.1} parent=1 // pred_check_branch
      %82 = sbr.rel (0) target = $region49
    $region48: #{tpu_custom_call.1} parent=1 // pred_region
      %83 = dma.done [#allocation10], 1024
    $region49: #{tpu_custom_call.1} parent=1 // pred_fallthru
      _
    %s85 = sld [smem:[#allocation2]]
    %v86 = vld [vmem:[#allocation3] sm:$0xf]
    %v87 = vld [vmem:[#allocation6] sm:$0xf]
    %v88 = vld [vmem:[#allocation6 + $0x4] sm:$0xf]
    %v89 = vld [vmem:[#allocation6 + $0x8] sm:$0xf]
    %v90 = vld [vmem:[#allocation6 + $0xc] sm:$0xf]
    %v91 = vld [vmem:[#allocation6 + $0x10] sm:$0xf]
    %v92 = vld [vmem:[#allocation6 + $0x14] sm:$0xf]
    %v93 = vld [vmem:[#allocation6 + $0x18] sm:$0xf]
    %v94 = vld [vmem:[#allocation6 + $0x1c] sm:$0xf]
    %v95 = vld [vmem:[#allocation6 + $0x20] sm:$0xf]
    %v96 = vld [vmem:[#allocation6 + $0x24] sm:$0xf]
    %v97 = vld [vmem:[#allocation6 + $0x28] sm:$0xf]
    %v98 = vld [vmem:[#allocation6 + $0x2c] sm:$0xf]
    %v99 = vld [vmem:[#allocation6 + $0x30] sm:$0xf]
    %v100 = vld [vmem:[#allocation6 + $0x34] sm:$0xf]
    %v101 = vld [vmem:[#allocation6 + $0x38] sm:$0xf]
    %v102 = vld [vmem:[#allocation6 + $0x3c] sm:$0xf]
    %v103 = vld [vmem:[%s3] sm:$0x1]
    %v105 = vlaneseq
    %v106 = vshrl.u32 %v105, 7
    %v107 = vsub.s32 0, %v106
    %v108 = vrot.slane %v103, %v107
    %v126 = vunpack.c.l.b16 %v87
    %v127 = vunpack.c.l.b16 %v88
    %v128 = vunpack.c.l.b16 %v89
    %v129 = vunpack.c.l.b16 %v90
    %v130 = vunpack.c.l.b16 %v91
    %v131 = vunpack.c.l.b16 %v92
    %v132 = vunpack.c.l.b16 %v93
    %v133 = vunpack.c.l.b16 %v94
    %v134 = vunpack.c.l.b16 %v95
    %v135 = vunpack.c.l.b16 %v96
    %v136 = vunpack.c.l.b16 %v97
    %v137 = vunpack.c.l.b16 %v98
    %v138 = vunpack.c.l.b16 %v99
    %v139 = vunpack.c.l.b16 %v100
    %v140 = vunpack.c.l.b16 %v101
    %v141 = vunpack.c.l.b16 %v102
    %v142 = vpack.c.b16 %v127, %v126
    %v143 = vpack.c.b16 %v129, %v128
    %v144 = vpack.c.b16 %v131, %v130
    %v145 = vpack.c.b16 %v133, %v132
    %v146 = vpack.c.b16 %v135, %v134
    %v147 = vpack.c.b16 %v137, %v136
    %v148 = vpack.c.b16 %v139, %v138
    %v149 = vpack.c.b16 %v141, %v140
    %158 = vmatprep.subr.bf16.mxu0 0
    %159 = vmatpush1.bf16.msra.mxu0 %v142
    %160 = vmatprep.subr.bf16.mxu0 0
    %161 = vmatpush1.bf16.msra.mxu0 %v143
    %162 = vmatprep.subr.bf16.mxu0 0
    %163 = vmatpush1.bf16.msra.mxu0 %v144
    %164 = vmatprep.subr.bf16.mxu0 0
    %165 = vmatpush1.bf16.msra.mxu0 %v145
    %166 = vmatprep.subr.bf16.mxu0 0
    %167 = vmatpush1.bf16.msra.mxu0 %v146
    %168 = vmatprep.subr.bf16.mxu0 0
    %169 = vmatpush1.bf16.msra.mxu0 %v147
    %170 = vmatprep.subr.bf16.mxu0 0
    %171 = vmatpush1.bf16.msra.mxu0 %v148
    %172 = vmatprep.subr.bf16.mxu0 0
    %173 = vmatpush1.bf16.msra.mxu0 %v149
    %174 = vmatprep.subr.bf16.mxu0 0
    %175 = vmatpush1.bf16.msra.mxu0 0
    %176 = vmatprep.subr.bf16.mxu0 0
    %177 = vmatpush1.bf16.msra.mxu0 0
    %178 = vmatprep.subr.bf16.mxu0 0
    %179 = vmatpush1.bf16.msra.mxu0 0
    %180 = vmatprep.subr.bf16.mxu0 0
    %181 = vmatpush1.bf16.msra.mxu0 0
    %182 = vmatprep.subr.bf16.mxu0 0
    %183 = vmatpush1.bf16.msra.mxu0 0
    %184 = vmatprep.subr.bf16.mxu0 0
    %185 = vmatpush1.bf16.msra.mxu0 0
    %186 = vmatprep.subr.bf16.mxu0 0
    %187 = vmatpush1.bf16.msra.mxu0 0
    %188 = vmatprep.subr.bf16.mxu0 0
    %189 = vmatpush1.bf16.msra.mxu0 0
    %190 = vmatprep.mubr.bf16.mxu0 0
    %191 = vmatmul.mubr.bf16.gmra.mrb[0].mxu0 %v86
    %v192 = vpop.f32.mrb[0].mxu0
    %v193 = vadd.f32 %v108, %v192
    %v194 = vpop.f32.mrb[0].mxu0
    %v195 = vpop.f32.mrb[0].mxu0
    %v196 = vpop.f32.mrb[0].mxu0
    %197 = vdwg.mxu0
    %v198 = vmax.f32 %v193, 0.0
    %v199 = vpack.c.bf16 %v198, %v198
    %v200 = vld [vmem:[#allocation8] sm:$0xf]
    %v201 = vld [vmem:[#allocation8 + $0x4] sm:$0xf]
    %v202 = vld [vmem:[#allocation8 + $0x8] sm:$0xf]
    %v203 = vld [vmem:[#allocation8 + $0xc] sm:$0xf]
    %v204 = vld [vmem:[#allocation8 + $0x10] sm:$0xf]
    %v205 = vld [vmem:[#allocation8 + $0x14] sm:$0xf]
    %v206 = vld [vmem:[#allocation8 + $0x18] sm:$0xf]
    %v207 = vld [vmem:[#allocation8 + $0x1c] sm:$0xf]
    %v208 = vld [vmem:[#allocation8 + $0x20] sm:$0xf]
    %v209 = vld [vmem:[#allocation8 + $0x24] sm:$0xf]
    %v210 = vld [vmem:[#allocation8 + $0x28] sm:$0xf]
    %v211 = vld [vmem:[#allocation8 + $0x2c] sm:$0xf]
    %v212 = vld [vmem:[#allocation8 + $0x30] sm:$0xf]
    %v213 = vld [vmem:[#allocation8 + $0x34] sm:$0xf]
    %v214 = vld [vmem:[#allocation8 + $0x38] sm:$0xf]
    %v215 = vld [vmem:[#allocation8 + $0x3c] sm:$0xf]
    %v216 = vld [vmem:[%s5] sm:$0x1]
    %v218 = vlaneseq
    %v219 = vshrl.u32 %v218, 7
    %v220 = vsub.s32 0, %v219
    %v221 = vrot.slane %v216, %v220
    %v239 = vunpack.c.l.b16 %v200
    %v240 = vunpack.c.l.b16 %v201
    %v241 = vunpack.c.l.b16 %v202
    %v242 = vunpack.c.l.b16 %v203
    %v243 = vunpack.c.l.b16 %v204
    %v244 = vunpack.c.l.b16 %v205
    %v245 = vunpack.c.l.b16 %v206
    %v246 = vunpack.c.l.b16 %v207
    %v247 = vunpack.c.l.b16 %v208
    %v248 = vunpack.c.l.b16 %v209
    %v249 = vunpack.c.l.b16 %v210
    %v250 = vunpack.c.l.b16 %v211
    %v251 = vunpack.c.l.b16 %v212
    %v252 = vunpack.c.l.b16 %v213
    %v253 = vunpack.c.l.b16 %v214
    %v254 = vunpack.c.l.b16 %v215
    %v255 = vpack.c.b16 %v240, %v239
    %v256 = vpack.c.b16 %v242, %v241
    %v257 = vpack.c.b16 %v244, %v243
    %v258 = vpack.c.b16 %v246, %v245
    %v259 = vpack.c.b16 %v248, %v247
    %v260 = vpack.c.b16 %v250, %v249
    %v261 = vpack.c.b16 %v252, %v251
    %v262 = vpack.c.b16 %v254, %v253
    %271 = vmatprep.subr.bf16.mxu0 0
    %272 = vmatpush1.bf16.msra.mxu0 %v255
    %273 = vmatprep.subr.bf16.mxu0 0
    %274 = vmatpush1.bf16.msra.mxu0 %v256
    %275 = vmatprep.subr.bf16.mxu0 0
    %276 = vmatpush1.bf16.msra.mxu0 %v257
    %277 = vmatprep.subr.bf16.mxu0 0
    %278 = vmatpush1.bf16.msra.mxu0 %v258
    %279 = vmatprep.subr.bf16.mxu0 0
    %280 = vmatpush1.bf16.msra.mxu0 %v259
    %281 = vmatprep.subr.bf16.mxu0 0
    %282 = vmatpush1.bf16.msra.mxu0 %v260
    %283 = vmatprep.subr.bf16.mxu0 0
    %284 = vmatpush1.bf16.msra.mxu0 %v261
    %285 = vmatprep.subr.bf16.mxu0 0
    %286 = vmatpush1.bf16.msra.mxu0 %v262
    %287 = vmatprep.subr.bf16.mxu0 0
    %288 = vmatpush1.bf16.msra.mxu0 0
    %289 = vmatprep.subr.bf16.mxu0 0
    %290 = vmatpush1.bf16.msra.mxu0 0
    %291 = vmatprep.subr.bf16.mxu0 0
    %292 = vmatpush1.bf16.msra.mxu0 0
    %293 = vmatprep.subr.bf16.mxu0 0
    %294 = vmatpush1.bf16.msra.mxu0 0
    %295 = vmatprep.subr.bf16.mxu0 0
    %296 = vmatpush1.bf16.msra.mxu0 0
    %297 = vmatprep.subr.bf16.mxu0 0
    %298 = vmatpush1.bf16.msra.mxu0 0
    %299 = vmatprep.subr.bf16.mxu0 0
    %300 = vmatpush1.bf16.msra.mxu0 0
    %301 = vmatprep.subr.bf16.mxu0 0
    %302 = vmatpush1.bf16.msra.mxu0 0
    %303 = vmatprep.mubr.bf16.mxu0 0
    %304 = vmatmul.mubr.bf16.gmra.mrb[0].mxu0 %v199
    %v305 = vpop.f32.mrb[0].mxu0
    %v306 = vadd.f32 %v221, %v305
    %v307 = vpop.f32.mrb[0].mxu0
    %v308 = vpop.f32.mrb[0].mxu0
    %v309 = vpop.f32.mrb[0].mxu0
    %310 = vdwg.mxu0
    %v311 = vmax.f32 %v306, 0.0
    %v312 = vpack.c.bf16 %v311, %v311
    %v313 = vld [vmem:[#allocation9] sm:$0xf]
    %v314 = vld [vmem:[#allocation9 + $0x4] sm:$0xf]
    %v315 = vld [vmem:[#allocation9 + $0x8] sm:$0xf]
    %v316 = vld [vmem:[#allocation9 + $0xc] sm:$0xf]
    %v317 = vld [vmem:[#allocation9 + $0x10] sm:$0xf]
    %v318 = vld [vmem:[#allocation9 + $0x14] sm:$0xf]
    %v319 = vld [vmem:[#allocation9 + $0x18] sm:$0xf]
    %v320 = vld [vmem:[#allocation9 + $0x1c] sm:$0xf]
    %v321 = vld [vmem:[#allocation9 + $0x20] sm:$0xf]
    %v322 = vld [vmem:[#allocation9 + $0x24] sm:$0xf]
    %v323 = vld [vmem:[#allocation9 + $0x28] sm:$0xf]
    %v324 = vld [vmem:[#allocation9 + $0x2c] sm:$0xf]
    %v325 = vld [vmem:[#allocation9 + $0x30] sm:$0xf]
    %v326 = vld [vmem:[#allocation9 + $0x34] sm:$0xf]
    %v327 = vld [vmem:[#allocation9 + $0x38] sm:$0xf]
    %v328 = vld [vmem:[#allocation9 + $0x3c] sm:$0xf]
    %v329 = vld [vmem:[%s7] sm:$0x1]
    %v331 = vlaneseq
    %v332 = vshrl.u32 %v331, 7
    %v333 = vsub.s32 0, %v332
    %v334 = vrot.slane %v329, %v333
    %v352 = vunpack.c.l.b16 %v313
    %v353 = vunpack.c.l.b16 %v314
    %v354 = vunpack.c.l.b16 %v315
    %v355 = vunpack.c.l.b16 %v316
    %v356 = vunpack.c.l.b16 %v317
    %v357 = vunpack.c.l.b16 %v318
    %v358 = vunpack.c.l.b16 %v319
    %v359 = vunpack.c.l.b16 %v320
    %v360 = vunpack.c.l.b16 %v321
    %v361 = vunpack.c.l.b16 %v322
    %v362 = vunpack.c.l.b16 %v323
    %v363 = vunpack.c.l.b16 %v324
    %v364 = vunpack.c.l.b16 %v325
    %v365 = vunpack.c.l.b16 %v326
    %v366 = vunpack.c.l.b16 %v327
    %v367 = vunpack.c.l.b16 %v328
    %v368 = vpack.c.b16 %v353, %v352
    %v369 = vpack.c.b16 %v355, %v354
    %v370 = vpack.c.b16 %v357, %v356
    %v371 = vpack.c.b16 %v359, %v358
    %v372 = vpack.c.b16 %v361, %v360
    %v373 = vpack.c.b16 %v363, %v362
    %v374 = vpack.c.b16 %v365, %v364
    %v375 = vpack.c.b16 %v367, %v366
    %384 = vmatprep.subr.bf16.mxu0 0
    %385 = vmatpush1.bf16.msra.mxu0 %v368
    %386 = vmatprep.subr.bf16.mxu0 0
    %387 = vmatpush1.bf16.msra.mxu0 %v369
    %388 = vmatprep.subr.bf16.mxu0 0
    %389 = vmatpush1.bf16.msra.mxu0 %v370
    %390 = vmatprep.subr.bf16.mxu0 0
    %391 = vmatpush1.bf16.msra.mxu0 %v371
    %392 = vmatprep.subr.bf16.mxu0 0
    %393 = vmatpush1.bf16.msra.mxu0 %v372
    %394 = vmatprep.subr.bf16.mxu0 0
    %395 = vmatpush1.bf16.msra.mxu0 %v373
    %396 = vmatprep.subr.bf16.mxu0 0
    %397 = vmatpush1.bf16.msra.mxu0 %v374
    %398 = vmatprep.subr.bf16.mxu0 0
    %399 = vmatpush1.bf16.msra.mxu0 %v375
    %400 = vmatprep.subr.bf16.mxu0 0
    %401 = vmatpush1.bf16.msra.mxu0 0
    %402 = vmatprep.subr.bf16.mxu0 0
    %403 = vmatpush1.bf16.msra.mxu0 0
    %404 = vmatprep.subr.bf16.mxu0 0
    %405 = vmatpush1.bf16.msra.mxu0 0
    %406 = vmatprep.subr.bf16.mxu0 0
    %407 = vmatpush1.bf16.msra.mxu0 0
    %408 = vmatprep.subr.bf16.mxu0 0
    %409 = vmatpush1.bf16.msra.mxu0 0
    %410 = vmatprep.subr.bf16.mxu0 0
    %411 = vmatpush1.bf16.msra.mxu0 0
    %412 = vmatprep.subr.bf16.mxu0 0
    %413 = vmatpush1.bf16.msra.mxu0 0
    %414 = vmatprep.subr.bf16.mxu0 0
    %415 = vmatpush1.bf16.msra.mxu0 0
    %416 = vmatprep.mubr.bf16.mxu0 0
    %417 = vmatmul.mubr.bf16.gmra.mrb[0].mxu0 %v312
    %v418 = vpop.f32.mrb[0].mxu0
    %v419 = vadd.f32 %v334, %v418
    %v420 = vpop.f32.mrb[0].mxu0
    %v421 = vpop.f32.mrb[0].mxu0
    %v422 = vpop.f32.mrb[0].mxu0
    %423 = vdwg.mxu0
    %v424 = vtanh.pop %v419
    %v425 = vstv %s85
    %v426 = vmul.f32 %v424, %v425
    %427 = vst [vmem:[#allocation11] sm:$0xff] %v426
    // Predicated region
    $region50: #{tpu_custom_call.1} parent=1 // pred_check
      _
    $region51: #{tpu_custom_call.1} parent=1 // pred_check_branch
      %429 = sbr.rel (0) target = $region53
    $region52: #{tpu_custom_call.1} parent=1 // pred_region
      %s431 = ssub.s32 128, 128
      %432 = vsyncadd [#allocation5], %s431
      %s434 = sshll.u32 [#allocation11], 4
      %s435 = int_to_ptr.vmem [resolvable:$true] %s434
      %437 = dma.vmem_to_hbm [thread:$0]  %s435, 128, %s8, [#allocation5]
    $region53: #{tpu_custom_call.1} parent=1 // pred_fallthru
      _
    // Predicated region
    $region54: #{tpu_custom_call.1} parent=1 // pred_check
      _
    $region55: #{tpu_custom_call.1} parent=1 // pred_check_branch
      %439 = sbr.rel (0) target = $region57
    $region56: #{tpu_custom_call.1} parent=1 // pred_region
      %440 = dma.done [#allocation5], 128
    $region57: #{tpu_custom_call.1} parent=1 // pred_fallthru
      _
    %441 = vsyncpa [#allocation4], 1
    %442 = vsyncpa [#allocation7], 1
    %443 = vsyncpa [#allocation10], 1
    %444 = vsyncpa [#allocation5], 1

</llo_original>
